<compile_context>
chip_gen: v5e
topology: v5e:2x2
jax: 0.10.0
libtpu: 0.0.40
codegen_flags: <defaults>
</compile_context>

<pallas_src>
import jax
import jax.numpy as jnp
from jax.experimental import pallas as pl
from jax.experimental.pallas import tpu as pltpu

LANE = 128


def _round_up(x, m):
    return (x + m - 1) // m * m


# ---------------------------------------------------------------------------
# Pallas kernel 1: tiled (matmul + per-column affine [+ ReLU]) on the MXU.
# Used for conv-as-im2col-matmul (BN+ReLU fused, bf16 out) and for the hoisted
# GRU input projection (bias only, f32 out).
# ---------------------------------------------------------------------------
def _make_matmul_affine_kernel(apply_relu, has_scale):
    if has_scale:
        def kernel(a_ref, w_ref, scale_ref, shift_ref, o_ref):
            y = jnp.dot(a_ref[...], w_ref[...], preferred_element_type=jnp.float32)
            y = y * scale_ref[...] + shift_ref[...]
            if apply_relu:
                y = jnp.maximum(y, 0.0)
            o_ref[...] = y.astype(o_ref.dtype)
    else:
        def kernel(a_ref, w_ref, shift_ref, o_ref):
            y = jnp.dot(a_ref[...], w_ref[...], preferred_element_type=jnp.float32)
            y = y + shift_ref[...]
            if apply_relu:
                y = jnp.maximum(y, 0.0)
            o_ref[...] = y.astype(o_ref.dtype)
    return kernel


def matmul_affine(a, w_bf16, shift, *, scale=None, apply_relu, out_dtype,
                  tile_m=512):
    """(M, K) @ (K, Np) bf16 -> (M, Np), per-column affine, optional ReLU.

    Np must be a multiple of 128 (lane-dense output).  M is tiled with a
    "parallel" grid axis (shards across TCs on v7x); tile_m=512 sits near the
    measured HBM-roofline sweet spot and keeps double-buffered blocks far below
    the default 32 MiB scoped VMEM on every generation at these K/N.
    The last tile may be ragged (cdiv grid, masked writeback) - no wrapper pad.
    """
    m_orig, k = a.shape
    n = w_bf16.shape[1]
    if a.dtype != jnp.bfloat16:
        a = a.astype(jnp.bfloat16)
    m = m_orig
    if m % 8:                               # sublane alignment only (rare, tiny)
        a = jnp.pad(a, ((0, 8 - m % 8), (0, 0)))
        m = a.shape[0]
    tm = min(tile_m, m)

    in_specs = [pl.BlockSpec((tm, k), lambda i: (i, 0)),
                pl.BlockSpec((k, n), lambda i: (0, 0))]
    args = [a, w_bf16]
    if scale is not None:
        in_specs.append(pl.BlockSpec((1, n), lambda i: (0, 0)))
        args.append(scale)
    in_specs.append(pl.BlockSpec((1, n), lambda i: (0, 0)))
    args.append(shift)

    out = pl.pallas_call(
        _make_matmul_affine_kernel(apply_relu, scale is not None),
        grid=(pl.cdiv(m, tm),),
        in_specs=in_specs,
        out_specs=pl.BlockSpec((tm, n), lambda i: (i, 0)),
        out_shape=jax.ShapeDtypeStruct((m, n), out_dtype),
        compiler_params=pltpu.CompilerParams(
            dimension_semantics=("parallel",)),
    )(*args)
    return out[:m_orig] if m != m_orig else out


# ---------------------------------------------------------------------------
# Pallas kernel 2: fused GRU recurrence (input projection pre-hoisted) +
# 3-stage residual VQ on the final hidden state.
#   grid = (batch blocks ["parallel"], T chunks ["arbitrary"])
#   gi   : (T, B, 3*Hp) f32, streamed as (tt, bb, 3*Hp) chunks (time-major, no transpose)
#   whh  : (Hp, 3*Hp) bf16   -- single fused hidden matmul per timestep
#   bhh  : (1, 3*Hp) f32     -- zeros for r/z, b_hn for n (b_ir+b_hr etc. folded into gi)
#   cb/cbt/cbsq : padded codebooks (K padded to 128 lanes with +1e30 distance sentinel)
# ---------------------------------------------------------------------------
def _make_gru_rvq_kernel(t_total, e_dim):
    def kernel(gi_ref, whh_ref, bhh_ref, cb_ref, cbt_ref, cbsq_ref,
               zcat_ref, idx_ref, loss_ref, h_ref):
        ti = pl.program_id(1)
        nt = pl.num_programs(1)
        tt = gi_ref.shape[0]
        bb, hp = h_ref.shape
        kp = cb_ref.shape[1]

        @pl.when(ti == 0)
        def _():
            h_ref[...] = jnp.zeros_like(h_ref)

        whh = whh_ref[...]                    # (Hp, 3*Hp) bf16
        bhh = bhh_ref[...]                    # (1, 3*Hp) f32
        t_base = ti * tt

        def step(t, h):
            gi = gi_ref[t]                                            # (bb, 3*Hp)
            gh = jnp.dot(h.astype(jnp.bfloat16), whh,
                         preferred_element_type=jnp.float32) + bhh    # (bb, 3*Hp)
            # PyTorch gate order: r, z, n ; 128-aligned lane slices are free.
            r = jax.nn.sigmoid(gi[:, :hp] + gh[:, :hp])
            z = jax.nn.sigmoid(gi[:, hp:2 * hp] + gh[:, hp:2 * hp])
            n = jnp.tanh(gi[:, 2 * hp:] + r * gh[:, 2 * hp:])
            h_new = (1.0 - z) * n + z * h
            # Mask ragged tail steps of the final T chunk (static bounds keep unroll legal).
            return jnp.where(t_base + t < t_total, h_new, h)

        h_ref[...] = jax.lax.fori_loop(0, tt, step, h_ref[...], unroll=4)

        # ---- residual VQ on the final hidden state (VMEM-resident) ----
        @pl.when(ti == nt - 1)
        def _():
            x = h_ref[...]                                            # (bb, Hp), padded lanes 0

            def quantize(residual, s):
                # MXU distance: ||c||^2 - 2 r.c (per-row ||r||^2 dropped; argmin unchanged).
                neg2rc = jnp.dot(residual.astype(jnp.bfloat16), cbt_ref[s],
                                 preferred_element_type=jnp.float32) * -2.0
                dist = neg2rc + cbsq_ref[s]                           # (bb, Kp); pad rows +1e30
                iota = jax.lax.broadcasted_iota(jnp.int32, dist.shape, 1)
                min_d = jnp.min(dist, axis=1, keepdims=True)
                idx = jnp.min(jnp.where(dist == min_d, iota, kp),
                              axis=1, keepdims=True)                  # first argmin, (bb, 1)
                onehot = (iota == idx).astype(jnp.float32)
                zq = jnp.dot(onehot, cb_ref[s],
                             preferred_element_type=jnp.float32)      # exact f32 lookup
                err = zq - residual
                # TODO(synk): VectorQuantize source not provided; loss modeled as commitment
                # MSE of each quantizer's output against its input residual (weight 1.0).
                loss_col = jnp.sum(err * err, axis=1, keepdims=True) / float(e_dim)
                return zq, idx, loss_col

            z1, i1, l1 = quantize(x, 0)
            r1 = x - z1
            z2, i2, l2 = quantize(r1, 1)
            r2 = r1 - z2
            z3, i3, l3 = quantize(r2, 2)

            zcat_ref[0] = z1
            zcat_ref[1] = z2
            zcat_ref[2] = z3
            idx_ref[...] = jnp.concatenate([i1, i2, i3], axis=1)
            loss_ref[...] = l1 + l2 + l3          # per-sample; wrapper takes mean over B

    return kernel


def gru_residual_vq(hs, g, vq, *, t_chunk=32):
    """hs: (B, T, F*C) (feature order (F,C); W_ih rows pre-permuted) -> VQ outputs."""
    b, t, d_in = hs.shape
    hp = g["hp"]
    d = vq["d"]

    # Hoisted input projection for ALL timesteps, emitted time-major so the recurrence
    # streams contiguous (tt, B, 3*Hp) chunks with no gi transpose.
    hs_tm = jnp.transpose(hs, (1, 0, 2)).reshape(t * b, d_in)
    gi = matmul_affine(hs_tm, g["wih_t"], g["gi_shift"], scale=None,
                       apply_relu=False, out_dtype=jnp.float32)
    gi = gi.reshape(t, b, 3 * hp)

    # Batch-shard the serial recurrence across TensorCores when B is large enough (v7x).
    bb = b // 2 if (b >= 16 and b % 16 == 0) else b
    nb = b // bb
    tt = min(t, t_chunk)
    nt = pl.cdiv(t, tt)

    zcat, idx, loss = pl.pallas_call(
        _make_gru_rvq_kernel(t_total=t, e_dim=d),
        grid=(nb, nt),
        in_specs=[
            pl.BlockSpec((tt, bb, 3 * hp), lambda bi, ti: (ti, bi, 0)),
            pl.BlockSpec((hp, 3 * hp), lambda bi, ti: (0, 0)),
            pl.BlockSpec((1, 3 * hp), lambda bi, ti: (0, 0)),
            pl.BlockSpec((3, vq["kp"], hp), lambda bi, ti: (0, 0, 0)),
            pl.BlockSpec((3, hp, vq["kp"]), lambda bi, ti: (0, 0, 0)),
            pl.BlockSpec((3, 1, vq["kp"]), lambda bi, ti: (0, 0, 0)),
        ],
        out_specs=(
            pl.BlockSpec((3, bb, hp), lambda bi, ti: (0, bi, 0)),
            pl.BlockSpec((bb, 3), lambda bi, ti: (bi, 0)),
            pl.BlockSpec((bb, 1), lambda bi, ti: (bi, 0)),
        ),
        out_shape=(
            jax.ShapeDtypeStruct((3, b, hp), jnp.float32),   # z1 / z2 / z3 (lane-padded D)
            jax.ShapeDtypeStruct((b, 3), jnp.int32),          # packed indices
            jax.ShapeDtypeStruct((b, 1), jnp.float32),        # per-sample summed loss
        ),
        scratch_shapes=[pltpu.VMEM((bb, hp), jnp.float32)],
        compiler_params=pltpu.CompilerParams(
            dimension_semantics=("parallel", "arbitrary")),
    )(gi, g["whh"], g["bhh"], vq["cb"], vq["cbt"], vq["cbsq"])

    z1, z2, z3 = zcat[0, :, :d], zcat[1, :, :d], zcat[2, :, :d]
    vq_loss = jnp.mean(loss)           # == sum over 3 stages of per-stage MSE
    return z1, z2, z3, idx, vq_loss


# ---------------------------------------------------------------------------
# Glue: im2col, ReferenceEncoder conv stack, full forward
# ---------------------------------------------------------------------------
def im2col(x_nhwc, ksize, stride, pad):
    b, h, w, c = x_nhwc.shape
    xp = jnp.pad(x_nhwc, ((0, 0), (pad, pad), (pad, pad), (0, 0)))
    h_out = (h - ksize + 2 * pad) // stride + 1
    w_out = (w - ksize + 2 * pad) // stride + 1
    cols = []
    for di in range(ksize):
        for dj in range(ksize):
            cols.append(xp[:, di:di + stride * h_out:stride,
                           dj:dj + stride * w_out:stride, :])
    return jnp.concatenate(cols, axis=-1), h_out, w_out


def reference_encoder_convs(speech, params, ksize=3, stride=2):
    """speech (B, Lmax, idim) -> hs (B, T, F*C) bf16, feature order (F, C)."""
    b = speech.shape[0]
    pad = (ksize - 1) // 2
    x = speech[:, :, :, None].astype(jnp.bfloat16)          # NHWC, C=1
    for layer in params["convs"]:
        patches, h_out, w_out = im2col(x, ksize, stride, pad)
        c_in = x.shape[-1]
        a = patches.reshape(b * h_out * w_out, ksize * ksize * c_in)
        # conv-as-matmul fused with BatchNorm(eval) affine + ReLU; bf16 activations out.
        y = matmul_affine(a, layer["w"], layer["shift"], scale=layer["scale"],
                          apply_relu=True, out_dtype=jnp.bfloat16)
        # TODO(synk): im2col + this narrow slice are still XLA-side; a fully fused 3x3
        # stride-2 conv kernel (9 shifted dots on a VMEM-resident tile) would remove them.
        y = y[:, :layer["c_out"]]
        x = y.reshape(b, h_out, w_out, layer["c_out"])
    b_, t_, f_, c_ = x.shape
    # Torch flattens (B,T,C,F); we keep (F,C) order here and permute W_ih rows instead,
    # so no activation transpose is needed.
    return x.reshape(b_, t_, f_ * c_)


def residual_vq_forward(speech, params):
    hs = reference_encoder_convs(speech, params)
    z1, z2, z3, idx, vq_loss = gru_residual_vq(hs, params["gru"], params["vq"])
    z_q_out = jnp.concatenate([z1, z2, z3], axis=1)
    indices_1 = idx[:, 0]
    codebooks = [z1, z2, z3, z1 + z2 + z3]
    # NOTE: emotion_classifier is defined in the module but unused in forward.
    return z_q_out, vq_loss, indices_1, codebooks


# ---------------------------------------------------------------------------
# Parameter preparation: fold BN, pad to lane-dense layouts, pre-cast MXU
# operands to bf16, fold r/z hidden biases into the hoisted input projection,
# permute W_ih rows to the conv output's (F, C) feature order.
# ---------------------------------------------------------------------------
def prepare_params(raw, ksize):
    convs = []
    for layer in raw["convs"]:
        c_out, c_in = layer["w"].shape[0], layer["w"].shape[1]
        # torch weight (C_out, C_in, kh, kw) -> (kh, kw, C_in, C_out) -> (K, C_out)
        wmat = jnp.transpose(layer["w"], (2, 3, 1, 0)).reshape(
            ksize * ksize * c_in, c_out)
        scale = layer["gamma"] / jnp.sqrt(layer["var"] + 1e-5)
        shift = layer["beta"] - layer["mean"] * scale
        n_pad = _round_up(c_out, LANE)
        convs.append(dict(
            w=jnp.pad(wmat, ((0, 0), (0, n_pad - c_out))).astype(jnp.bfloat16),
            scale=jnp.pad(scale, (0, n_pad - c_out))[None, :],
            shift=jnp.pad(shift, (0, n_pad - c_out))[None, :],
            c_out=c_out,
        ))

    g = raw["gru"]
    w_ih, w_hh, b_ih, b_hh = g["w_ih"], g["w_hh"], g["b_ih"], g["b_hh"]
    h_units = w_hh.shape[1]
    d_in = w_ih.shape[1]
    c_last = raw["convs"][-1]["w"].shape[0]
    f_dim = d_in // c_last
    hp = _round_up(h_units, LANE)

    wih_t = jnp.zeros((d_in, 3 * hp), jnp.float32)
    gi_shift = jnp.zeros((3 * hp,), jnp.float32)
    whh = jnp.zeros((hp, 3 * hp), jnp.float32)
    bhh = jnp.zeros((3 * hp,), jnp.float32)
    for gate in range(3):                       # PyTorch gate order: r, z, n
        wg_i = w_ih[gate * h_units:(gate + 1) * h_units, :]        # (h, d_in), cols (C,F)-ordered
        # permute input features from torch's (C, F) order to our (F, C) conv output order
        wg_i_t = wg_i.T.reshape(c_last, f_dim, h_units).transpose(1, 0, 2)
        wg_i_t = wg_i_t.reshape(d_in, h_units)
        wih_t = wih_t.at[:, gate * hp:gate * hp + h_units].set(wg_i_t)
        wg_h = w_hh[gate * h_units:(gate + 1) * h_units, :]
        whh = whh.at[:h_units, gate * hp:gate * hp + h_units].set(wg_h.T)
        bg = b_ih[gate * h_units:(gate + 1) * h_units]
        if gate < 2:   # fold b_hh into the precomputed gi for r/z; n keeps b_hn separate
            bg = bg + b_hh[gate * h_units:(gate + 1) * h_units]
        gi_shift = gi_shift.at[gate * hp:gate * hp + h_units].set(bg)
    bhh = bhh.at[2 * hp:2 * hp + h_units].set(b_hh[2 * h_units:3 * h_units])

    gru = dict(
        wih_t=wih_t.astype(jnp.bfloat16),
        gi_shift=gi_shift[None, :],
        whh=whh.astype(jnp.bfloat16),
        bhh=bhh[None, :],
        h_units=h_units,
        hp=hp,
    )

    cb = jnp.stack(raw["codebooks"], axis=0)                       # (3, K, D)
    k, d = cb.shape[1], cb.shape[2]
    # TODO(synk): original module has e_dim=256 vs gru_units=128 (inconsistent); this
    # implementation (like the PyTorch forward would need) requires e_dim == gru_units.
    assert d == h_units, "VQ e_dim must match gru_units"
    kp = _round_up(k, LANE)
    cb_pad = jnp.pad(cb, ((0, 0), (0, kp - k), (0, hp - d)))       # (3, Kp, Hp) f32
    cbt = jnp.transpose(cb_pad, (0, 2, 1)).astype(jnp.bfloat16)    # (3, Hp, Kp) bf16
    cbsq = jnp.sum(cb_pad * cb_pad, axis=-1)                       # (3, Kp)
    cbsq = jnp.where(jnp.arange(kp)[None, :] < k, cbsq, 1e30)[:, None, :]
    vq = dict(cb=cb_pad, cbt=cbt, cbsq=cbsq, k=k, kp=kp, d=d)

    return dict(convs=convs, gru=gru, vq=vq)


# ---------------------------------------------------------------------------
# Deterministic synthetic parameters (torch layouts)
# ---------------------------------------------------------------------------
def build_params(key, idim, conv_chans, ksize, gru_units, e_dim, n_e):
    keys = iter(jax.random.split(key, 64))
    convs = []
    c_in = 1
    for c_out in conv_chans:
        convs.append(dict(
            w=0.2 * jax.random.normal(next(keys), (c_out, c_in, ksize, ksize), jnp.float32),
            gamma=1.0 + 0.1 * jax.random.normal(next(keys), (c_out,), jnp.float32),
            beta=0.1 * jax.random.normal(next(keys), (c_out,), jnp.float32),
            mean=0.1 * jax.random.normal(next(keys), (c_out,), jnp.float32),
            var=1.0 + 0.1 * jax.random.uniform(next(keys), (c_out,), jnp.float32),
        ))
        c_in = c_out
    pad = (ksize - 1) // 2
    f = idim
    for _ in conv_chans:
        f = (f - ksize + 2 * pad) // 2 + 1
    gru_in = f * conv_chans[-1]
    gru = dict(
        w_ih=0.2 * jax.random.normal(next(keys), (3 * gru_units, gru_in), jnp.float32),
        w_hh=0.2 * jax.random.normal(next(keys), (3 * gru_units, gru_units), jnp.float32),
        b_ih=0.1 * jax.random.normal(next(keys), (3 * gru_units,), jnp.float32),
        b_hh=0.1 * jax.random.normal(next(keys), (3 * gru_units,), jnp.float32),
    )
    # TODO(synk): kmeans_init of the codebooks happens at first training forward in
    # vector_quantize_pytorch; replaced with deterministic random codebooks.
    codebooks = [0.5 * jax.random.normal(next(keys), (n_e, e_dim), jnp.float32)
                 for _ in range(3)]
    return dict(convs=convs, gru=gru, codebooks=codebooks)


if __name__ == "__main__":
    # Small shapes consistent with the module (scaled-down hyperparameters).
    B, LMAX, IDIM = 2, 16, 16
    CONV_CHANS = (4, 8)          # conv_layers=2
    KSIZE = 3
    GRU_UNITS = 32
    E_DIM = 32                   # == gru_units so the VQ applies to the GRU embedding
    N_E = 7

    key = jax.random.PRNGKey(0)
    pkey, skey = jax.random.split(key)
    raw_params = build_params(pkey, IDIM, CONV_CHANS, KSIZE, GRU_UNITS, E_DIM, N_E)
    params = prepare_params(raw_params, KSIZE)
    speech = jax.random.normal(skey, (B, LMAX, IDIM), jnp.float32)
    emotions = jnp.zeros((B,), jnp.int32)   # unused by the reference forward

    z_q_out, vq_loss, indices_1, codebooks = residual_vq_forward(speech, params)
    jax.block_until_ready((z_q_out, vq_loss, indices_1, codebooks))

    assert z_q_out.shape == (B, 3 * E_DIM)
    assert indices_1.shape == (B,)
    assert vq_loss.shape == ()
    assert len(codebooks) == 4 and codebooks[0].shape == (B, E_DIM)
    print("KERNEL_OK")
</pallas_src>

<mosaic_0001>
module attributes {stable_mosaic.version = 11 : i64} {
  func.func @kernel(%arg0: i32, %arg1: memref<128x9xbf16, #tpu.memory_space<vmem>>, %arg2: memref<9x128xbf16, #tpu.memory_space<vmem>>, %arg3: memref<1x128xf32, #tpu.memory_space<vmem>>, %arg4: memref<1x128xf32, #tpu.memory_space<vmem>>, %arg5: memref<128x128xbf16, #tpu.memory_space<vmem>>) attributes {dimension_semantics = [#tpu.dimension_semantics<parallel>], iteration_bounds = array<i64: 1>, scalar_prefetch = 0 : i64, scratch_operands = 0 : i64, tpu.core_type = #tpu.core_type<tc>, window_params = [{transform_indices = @transform_0, window_bounds = array<i64: 128, 9>}, {pipeline_mode = #tpu.pipeline_mode<synchronous>, transform_indices = @transform_1, window_bounds = array<i64: 9, 128>}, {pipeline_mode = #tpu.pipeline_mode<synchronous>, transform_indices = @transform_2, window_bounds = array<i64: 1, 128>}, {pipeline_mode = #tpu.pipeline_mode<synchronous>, transform_indices = @transform_3, window_bounds = array<i64: 1, 128>}, {transform_indices = @transform_4, window_bounds = array<i64: 128, 128>}]} {
    %c0 = arith.constant 0 : index
    %c0_0 = arith.constant 0 : index
    %0 = vector.load %arg1[%c0, %c0_0] : memref<128x9xbf16, #tpu.memory_space<vmem>>, vector<128x9xbf16>
    %c0_1 = arith.constant 0 : index
    %c0_2 = arith.constant 0 : index
    %1 = vector.load %arg2[%c0_1, %c0_2] : memref<9x128xbf16, #tpu.memory_space<vmem>>, vector<9x128xbf16>
    %cst = arith.constant dense<0.000000e+00> : vector<128x128xf32>
    %2 = tpu.matmul %0, %1, %cst {dimension_numbers = #tpu.dot_dimension_numbers<[1], [0], [0], [1], [0, 0, 1, 1], [], []>} : vector<128x9xbf16>, vector<9x128xbf16>, vector<128x128xf32> -> vector<128x128xf32>
    %c0_3 = arith.constant 0 : index
    %c0_4 = arith.constant 0 : index
    %3 = vector.load %arg3[%c0_3, %c0_4] : memref<1x128xf32, #tpu.memory_space<vmem>>, vector<1x128xf32>
    %4 = vector.broadcast %3 : vector<1x128xf32> to vector<128x128xf32>
    %5 = arith.mulf %2, %4 : vector<128x128xf32>
    %c0_5 = arith.constant 0 : index
    %c0_6 = arith.constant 0 : index
    %6 = vector.load %arg4[%c0_5, %c0_6] : memref<1x128xf32, #tpu.memory_space<vmem>>, vector<1x128xf32>
    %7 = vector.broadcast %6 : vector<1x128xf32> to vector<128x128xf32>
    %8 = arith.addf %5, %7 : vector<128x128xf32>
    %cst_7 = arith.constant 0.000000e+00 : f32
    %9 = vector.broadcast %cst_7 : f32 to vector<128x128xf32>
    %10 = arith.maximumf %8, %9 : vector<128x128xf32>
    %11 = arith.truncf %10 : vector<128x128xf32> to vector<128x128xbf16>
    %c0_8 = arith.constant 0 : index
    %c0_9 = arith.constant 0 : index
    %12 = vector.load %arg5[%c0_8, %c0_9] : memref<128x128xbf16, #tpu.memory_space<vmem>>, vector<128x128xbf16>
    tpu.vector_store %arg5[%c0_8, %c0_9], %11 {strides = array<i32>} : memref<128x128xbf16, #tpu.memory_space<vmem>>, vector<128x128xbf16>,
    return
  }
  func.func @transform_0(%arg0: i32) -> (i32, i32) {
    %c0_i32 = arith.constant 0 : i32
    %c0_i32_0 = arith.constant 0 : i32
    return %arg0, %c0_i32 : i32, i32
  }
  func.func @transform_1(%arg0: i32) -> (i32, i32) {
    %c0_i32 = arith.constant 0 : i32
    %c0_i32_0 = arith.constant 0 : i32
    %c0_i32_1 = arith.constant 0 : i32
    return %c0_i32, %c0_i32_0 : i32, i32
  }
  func.func @transform_2(%arg0: i32) -> (i32, i32) {
    %c0_i32 = arith.constant 0 : i32
    %c0_i32_0 = arith.constant 0 : i32
    %c0_i32_1 = arith.constant 0 : i32
    return %c0_i32, %c0_i32_0 : i32, i32
  }
  func.func @transform_3(%arg0: i32) -> (i32, i32) {
    %c0_i32 = arith.constant 0 : i32
    %c0_i32_0 = arith.constant 0 : i32
    %c0_i32_1 = arith.constant 0 : i32
    return %c0_i32, %c0_i32_0 : i32, i32
  }
  func.func @transform_4(%arg0: i32) -> (i32, i32) {
    %c0_i32 = arith.constant 0 : i32
    %c0_i32_0 = arith.constant 0 : i32
    return %arg0, %c0_i32 : i32, i32
  }
}

</mosaic_0001>

<llo_original>
// kernel: tpu_custom_call.1
$region0: #{tpu_custom_call.1}
  #allocation0 [shape = 'u32[]', space=smem, size = 0x4, offset = 0x4, fixed_abs, tag = 'smem constant byte address 0x4 - core index']
  #allocation1 [shape = 'u32[72,128]{1,0:T(1,128)}', space=vmem, size = 0x9000, scoped, tag = 'internal scratch']
  %s0 = inlined_call_operand.vmem [shape: bf16[128,9], index: 0, kind: input, shape index: {}]
  %s1 = inlined_call_operand.vmem [shape: bf16[9,128], index: 1, kind: input, shape index: {}]
  %s2 = inlined_call_operand.vmem [shape: f32[1,128], index: 2, kind: input, shape index: {}]
  %s3 = inlined_call_operand.vmem [shape: f32[1,128], index: 3, kind: input, shape index: {}]
  %s4 = inlined_call_operand.hbm [shape: bf16[128,128], index: 4, kind: output, shape index: {}]
  %s5 = sld [smem:[#allocation0]]
  $region26: #{tpu_custom_call.1} parent=0
    _
  %s7 = ssub.s32 1, %s5
  %s8 = scalar_select 0, %s7, %s5
  $region1: #{tpu_custom_call.1} parent=0
    #allocation2 [shape = 'u8[32768]{0}', space=vmem, size = 0x8000, scoped, tag = 'output window, operand 0, single buffered']
    #allocation3 [shape = 's32[1]{0}', space=sflag, size = 0x4, scoped, tag = 'scoped memory for tpu_custom_call.1']
    %9 = vsyncpa [#allocation3], 0
    // Predicated region
    $region2: #{tpu_custom_call.1} parent=1 // pred_check
      _
    $region3: #{tpu_custom_call.1} parent=1 // pred_check_branch
      %11 = sbr.rel (0) target = $region5
    $region4: #{tpu_custom_call.1} parent=1 // pred_region
      _
    $region5: #{tpu_custom_call.1} parent=1 // pred_fallthru
      _
    // Predicated region
    $region6: #{tpu_custom_call.1} parent=1 // pred_check
      _
    $region7: #{tpu_custom_call.1} parent=1 // pred_check_branch
      %13 = sbr.rel (0) target = $region9
    $region8: #{tpu_custom_call.1} parent=1 // pred_region
      _
    $region9: #{tpu_custom_call.1} parent=1 // pred_fallthru
      _
    // Predicated region
    $region10: #{tpu_custom_call.1} parent=1 // pred_check
      _
    $region11: #{tpu_custom_call.1} parent=1 // pred_check_branch
      %15 = sbr.rel (0) target = $region13
    $region12: #{tpu_custom_call.1} parent=1 // pred_region
      _
    $region13: #{tpu_custom_call.1} parent=1 // pred_fallthru
      _
    // Predicated region
    $region14: #{tpu_custom_call.1} parent=1 // pred_check
      _
    $region15: #{tpu_custom_call.1} parent=1 // pred_check_branch
      %17 = sbr.rel (0) target = $region17
    $region16: #{tpu_custom_call.1} parent=1 // pred_region
      _
    $region17: #{tpu_custom_call.1} parent=1 // pred_fallthru
      _
    %v19 = vld [vmem:[%s0] sm:$0xf]
    %v20 = vld [vmem:[%s0 + $0x4] sm:$0xf]
    %v21 = vld [vmem:[%s0 + $0x8] sm:$0xf]
    %v22 = vld [vmem:[%s0 + $0xc] sm:$0xf]
    %v23 = vld [vmem:[%s0 + $0x10] sm:$0xf]
    %v24 = vld [vmem:[%s0 + $0x14] sm:$0xf]
    %v25 = vld [vmem:[%s0 + $0x18] sm:$0xf]
    %v26 = vld [vmem:[%s0 + $0x1c] sm:$0xf]
    %v27 = vld [vmem:[%s0 + $0x20] sm:$0xf]
    %v28 = vld [vmem:[%s0 + $0x24] sm:$0xf]
    %v29 = vld [vmem:[%s0 + $0x28] sm:$0xf]
    %v30 = vld [vmem:[%s0 + $0x2c] sm:$0xf]
    %v31 = vld [vmem:[%s0 + $0x30] sm:$0xf]
    %v32 = vld [vmem:[%s0 + $0x34] sm:$0xf]
    %v33 = vld [vmem:[%s0 + $0x38] sm:$0xf]
    %v34 = vld [vmem:[%s0 + $0x3c] sm:$0xf]
    %v35 = vld [vmem:[%s1] sm:$0xf]
    %v36 = vld [vmem:[%s1 + $0x4] sm:$0x1]
    %v53 = vunpack.c.l.b16 %v19
    %v54 = vunpack.c.l.b16 %v20
    %v55 = vunpack.c.l.b16 %v21
    %v56 = vunpack.c.l.b16 %v22
    %v57 = vunpack.c.l.b16 %v23
    %v58 = vunpack.c.l.b16 %v24
    %v59 = vunpack.c.l.b16 %v25
    %v60 = vunpack.c.l.b16 %v26
    %v61 = vunpack.c.l.b16 %v27
    %v62 = vunpack.c.l.b16 %v28
    %v63 = vunpack.c.l.b16 %v29
    %v64 = vunpack.c.l.b16 %v30
    %v65 = vunpack.c.l.b16 %v31
    %v66 = vunpack.c.l.b16 %v32
    %v67 = vunpack.c.l.b16 %v33
    %v68 = vunpack.c.l.b16 %v34
    %v69 = vpack.c.b16 %v54, %v53
    %v70 = vpack.c.b16 %v56, %v55
    %v71 = vpack.c.b16 %v58, %v57
    %v72 = vpack.c.b16 %v60, %v59
    %v73 = vpack.c.b16 %v62, %v61
    %v74 = vpack.c.b16 %v64, %v63
    %v75 = vpack.c.b16 %v66, %v65
    %v76 = vpack.c.b16 %v68, %v67
    %v79 = vunpack.c.l.b16 %v35
    %v80 = vunpack.c.l.b16 %v36
    %v81 = vpack.c.b16 %v80, %v79
    %vm82 = vcmask 72704
    %v84 = vsel %vm82, %v69, 0
    %v87 = vsel %vm82, %v70, 0
    %v90 = vsel %vm82, %v71, 0
    %v93 = vsel %vm82, %v72, 0
    %v96 = vsel %vm82, %v73, 0
    %v99 = vsel %vm82, %v74, 0
    %v102 = vsel %vm82, %v75, 0
    %v105 = vsel %vm82, %v76, 0
    %vm107 = vcmask 1043456
    %vm108 = vcmask 1044480
    %v109 = vsel %vm107, 4294967295, 65535
    %v110 = vsel %vm108, %v109, 0
    %v112 = vand.u32 %v81, %v110
    %114 = vmatpush.bf16.msra.mxu0 0
    %115 = vmatpush.bf16.msra.mxu0 0
    %116 = vmatpush.bf16.msra.mxu0 0
    %117 = vmatpush.bf16.msra.mxu0 0
    %118 = vmatpush.bf16.msra.mxu0 0
    %119 = vmatpush.bf16.msra.mxu0 0
    %120 = vmatpush.bf16.msra.mxu0 0
    %121 = vmatpush.bf16.msra.mxu0 %v112
    %122 = vmatmul.bf16.gmra.mxu0 %v84
    %v123 = vpop.f32.mrf.mxu0
    %v124 = vadd.f32 0.0, %v123
    %v125 = vpop.f32.mrf.mxu0
    %v126 = vadd.f32 0.0, %v125
    %127 = vmatmul.bf16.gmra.mxu0 %v87
    %v128 = vpop.f32.mrf.mxu0
    %v129 = vadd.f32 0.0, %v128
    %v130 = vpop.f32.mrf.mxu0
    %v131 = vadd.f32 0.0, %v130
    %132 = vmatmul.bf16.gmra.mxu0 %v90
    %v133 = vpop.f32.mrf.mxu0
    %v134 = vadd.f32 0.0, %v133
    %v135 = vpop.f32.mrf.mxu0
    %v136 = vadd.f32 0.0, %v135
    %137 = vmatmul.bf16.gmra.mxu0 %v93
    %v138 = vpop.f32.mrf.mxu0
    %v139 = vadd.f32 0.0, %v138
    %v140 = vpop.f32.mrf.mxu0
    %v141 = vadd.f32 0.0, %v140
    %142 = vmatmul.bf16.gmra.mxu0 %v96
    %v143 = vpop.f32.mrf.mxu0
    %v144 = vadd.f32 0.0, %v143
    %v145 = vpop.f32.mrf.mxu0
    %v146 = vadd.f32 0.0, %v145
    %147 = vmatmul.bf16.gmra.mxu0 %v99
    %v148 = vpop.f32.mrf.mxu0
    %v149 = vadd.f32 0.0, %v148
    %v150 = vpop.f32.mrf.mxu0
    %v151 = vadd.f32 0.0, %v150
    %152 = vmatmul.bf16.gmra.mxu0 %v102
    %v153 = vpop.f32.mrf.mxu0
    %v154 = vadd.f32 0.0, %v153
    %v155 = vpop.f32.mrf.mxu0
    %v156 = vadd.f32 0.0, %v155
    %157 = vmatmul.bf16.gmra.mxu0 %v105
    %v158 = vpop.f32.mrf.mxu0
    %v159 = vadd.f32 0.0, %v158
    %v160 = vpop.f32.mrf.mxu0
    %v161 = vadd.f32 0.0, %v160
    %162 = vdwg.mxu0
    %v163 = vld [vmem:[%s2] sm:$0x1]
    %v165 = vperm.slane %v163, 0
    %v167 = vmul.f32 %v124, %v165
    %v168 = vmul.f32 %v126, %v165
    %v169 = vmul.f32 %v129, %v165
    %v170 = vmul.f32 %v131, %v165
    %v171 = vmul.f32 %v134, %v165
    %v172 = vmul.f32 %v136, %v165
    %v173 = vmul.f32 %v139, %v165
    %v174 = vmul.f32 %v141, %v165
    %v175 = vmul.f32 %v144, %v165
    %v176 = vmul.f32 %v146, %v165
    %v177 = vmul.f32 %v149, %v165
    %v178 = vmul.f32 %v151, %v165
    %v179 = vmul.f32 %v154, %v165
    %v180 = vmul.f32 %v156, %v165
    %v181 = vmul.f32 %v159, %v165
    %v182 = vmul.f32 %v161, %v165
    %v183 = vld [vmem:[%s3] sm:$0x1]
    %v185 = vperm.slane %v183, 0
    %v187 = vadd.f32 %v167, %v185
    %v188 = vadd.f32 %v168, %v185
    %v189 = vadd.f32 %v169, %v185
    %v190 = vadd.f32 %v170, %v185
    %v191 = vadd.f32 %v171, %v185
    %v192 = vadd.f32 %v172, %v185
    %v193 = vadd.f32 %v173, %v185
    %v194 = vadd.f32 %v174, %v185
    %v195 = vadd.f32 %v175, %v185
    %v196 = vadd.f32 %v176, %v185
    %v197 = vadd.f32 %v177, %v185
    %v198 = vadd.f32 %v178, %v185
    %v199 = vadd.f32 %v179, %v185
    %v200 = vadd.f32 %v180, %v185
    %v201 = vadd.f32 %v181, %v185
    %v202 = vadd.f32 %v182, %v185
    %v203 = vmax.f32 %v187, 0.0
    %v204 = vmax.f32 %v188, 0.0
    %v205 = vmax.f32 %v189, 0.0
    %v206 = vmax.f32 %v190, 0.0
    %v207 = vmax.f32 %v191, 0.0
    %v208 = vmax.f32 %v192, 0.0
    %v209 = vmax.f32 %v193, 0.0
    %v210 = vmax.f32 %v194, 0.0
    %v211 = vmax.f32 %v195, 0.0
    %v212 = vmax.f32 %v196, 0.0
    %v213 = vmax.f32 %v197, 0.0
    %v214 = vmax.f32 %v198, 0.0
    %v215 = vmax.f32 %v199, 0.0
    %v216 = vmax.f32 %v200, 0.0
    %v217 = vmax.f32 %v201, 0.0
    %v218 = vmax.f32 %v202, 0.0
    %v219 = vpack.c.bf16 %v203, %v203
    %v220 = vpack.c.bf16 %v204, %v204
    %v221 = vpack.c.bf16 %v205, %v205
    %v222 = vpack.c.bf16 %v206, %v206
    %v223 = vpack.c.bf16 %v207, %v207
    %v224 = vpack.c.bf16 %v208, %v208
    %v225 = vpack.c.bf16 %v209, %v209
    %v226 = vpack.c.bf16 %v210, %v210
    %v227 = vpack.c.bf16 %v211, %v211
    %v228 = vpack.c.bf16 %v212, %v212
    %v229 = vpack.c.bf16 %v213, %v213
    %v230 = vpack.c.bf16 %v214, %v214
    %v231 = vpack.c.bf16 %v215, %v215
    %v232 = vpack.c.bf16 %v216, %v216
    %v233 = vpack.c.bf16 %v217, %v217
    %v234 = vpack.c.bf16 %v218, %v218
    %235 = vst [vmem:[#allocation2] sm:$0xf] %v219
    %236 = vst [vmem:[#allocation2 + $0x4] sm:$0xf] %v220
    %237 = vst [vmem:[#allocation2 + $0x8] sm:$0xf] %v221
    %238 = vst [vmem:[#allocation2 + $0xc] sm:$0xf] %v222
    %239 = vst [vmem:[#allocation2 + $0x10] sm:$0xf] %v223
    %240 = vst [vmem:[#allocation2 + $0x14] sm:$0xf] %v224
    %241 = vst [vmem:[#allocation2 + $0x18] sm:$0xf] %v225
    %242 = vst [vmem:[#allocation2 + $0x1c] sm:$0xf] %v226
    %243 = vst [vmem:[#allocation2 + $0x20] sm:$0xf] %v227
    %244 = vst [vmem:[#allocation2 + $0x24] sm:$0xf] %v228
    %245 = vst [vmem:[#allocation2 + $0x28] sm:$0xf] %v229
    %246 = vst [vmem:[#allocation2 + $0x2c] sm:$0xf] %v230
    %247 = vst [vmem:[#allocation2 + $0x30] sm:$0xf] %v231
    %248 = vst [vmem:[#allocation2 + $0x34] sm:$0xf] %v232
    %249 = vst [vmem:[#allocation2 + $0x38] sm:$0xf] %v233
    %250 = vst [vmem:[#allocation2 + $0x3c] sm:$0xf] %v234
    // Predicated region
    $region18: #{tpu_custom_call.1} parent=1 // pred_check
      _
    $region19: #{tpu_custom_call.1} parent=1 // pred_check_branch
      %252 = sbr.rel (0) target = $region21
    $region20: #{tpu_custom_call.1} parent=1 // pred_region
      %254 = vsyncadd [#allocation3], 0
      %s255 = sshll.u32 [#allocation2], 4
      %s256 = int_to_ptr.vmem [resolvable:$true] %s255
      %s257 = sshll.u32 %s4, 4
      %s258 = int_to_ptr.hbm [resolvable:$true] %s257
      %263 = dma.vmem_to_hbm [thread:$0]  %s256, 1024, %s258, [#allocation3], 64, 64, 4
    $region21: #{tpu_custom_call.1} parent=1 // pred_fallthru
      _
    // Predicated region
    $region22: #{tpu_custom_call.1} parent=1 // pred_check
      _
    $region23: #{tpu_custom_call.1} parent=1 // pred_check_branch
      %265 = sbr.rel (0) target = $region25
    $region24: #{tpu_custom_call.1} parent=1 // pred_region
      %267 = dma.done [#allocation3], 1024
    $region25: #{tpu_custom_call.1} parent=1 // pred_fallthru
      _
    %268 = vsyncpa [#allocation3], 1

</llo_original>
